<compile_context>
chip_gen: v7x
topology: tpu7x:2x2x1
jax: 0.10.0
libtpu: 0.0.40
codegen_flags: <defaults>
</compile_context>

<pallas_src>
import functools

import jax
import jax.numpy as jnp
from jax import lax
from jax.experimental import pallas as pl
from jax.experimental.pallas import tpu as pltpu


_CHUNK = 8        # timesteps per inner-loop iteration (one sublane group)
_ROW_ALIGN = 16   # time-row alignment safe for both f32 (8) and bf16 (16) tiles
_VMEM_BUDGET = 8 << 20  # bytes for the double-buffered in+out streams


def _inverse_pre_emphasis_kernel(x_ref, o_ref, h_ref, *, coef, row_load):
    """One (T_TILE, LB) tile of h_t = tanh(x_t + coef * h_{t-1}).

    x_ref / o_ref : [T_TILE, LB] blocks (time x batch-lane block).
    h_ref         : [1, LB] float32 VMEM scratch carrying the hidden state
                    across time tiles (grid axis 1).
    row_load      : compile-time flag; load x one row at a time (caps vreg
                    pressure at wide lane blocks).
    """
    # First time tile of a batch block -> fresh hidden state (h_0 = 0).
    @pl.when(pl.program_id(1) == 0)
    def _():
        h_ref[...] = jnp.zeros_like(h_ref)

    t_tile, lb = x_ref.shape
    n_chunks = t_tile // _CHUNK

    # Hoisted coef splat: built once and threaded through the loop carry so it
    # is never re-broadcast inside the unrolled body.
    coef_v = jnp.full((1, lb), coef, dtype=jnp.float32)

    def body(c, carry):
        h, cv = carry
        base = pl.multiple_of(c * _CHUNK, _CHUNK)
        if not row_load:
            xc = x_ref[pl.ds(base, _CHUNK), :].astype(jnp.float32)  # [8, LB]
        for t in range(_CHUNK):  # unrolled: intermediate h stays in vregs
            if row_load:
                x_t = x_ref[pl.ds(base + t, 1), :].astype(jnp.float32)
            else:
                x_t = xc[t:t + 1, :]
            h = jnp.tanh(x_t + cv * h)
            # Per-row store: the vst slot has huge slack (<=1 access per
            # 15+-cycle chain step) and this keeps only `h` live across steps.
            o_ref[pl.ds(base + t, 1), :] = h.astype(o_ref.dtype)
        return (h, cv)

    h_fin, _ = lax.fori_loop(0, n_chunks, body, (h_ref[...], coef_v))
    h_ref[...] = h_fin


def _round_up(n, m):
    return ((n + m - 1) // m) * m


def _pick_lane_block(B):
    """Lane (last-dim) block size = batch sequences processed per grid step.

    - B <= 128 or B not 128-aligned: single block (lb == B == full last dim).
    - Otherwise widen up to 512 lanes (lb/128 interleaved tanh chains) while
      keeping >= 2 batch blocks for B >= 256 so v7x's two TensorCores split
      the "parallel" batch axis.
    """
    if B <= 128 or B % 128 != 0:
        return B
    for cand in (512, 384, 256, 128):
        if B % cand == 0 and B // cand >= 2:
            return cand
    return 128


def _pick_time_tile(T, lb, itemsize, requested):
    # Double-buffered in + out streams ~ 4 * t_tile * lb * itemsize bytes.
    max_tile = _VMEM_BUDGET // (4 * lb * itemsize)
    max_tile = max(_ROW_ALIGN, (max_tile // _ROW_ALIGN) * _ROW_ALIGN)
    t_tile = max_tile if requested is None else requested
    t_tile = int(min(t_tile, max_tile, _round_up(T, _ROW_ALIGN)))
    return _round_up(max(t_tile, _ROW_ALIGN), _ROW_ALIGN)


def inverse_pre_emphasis(x, coef=0.97, *, t_tile=None):
    """x: [B, 1, T] (PyTorch NCW layout). Returns [B, 1, T]."""
    B, C, T = x.shape
    assert C == 1, "InversePreEmphasis expects a single channel (RNN input size 1)"

    # [B, 1, T] -> [T, B]: time on sublanes, batch on lanes.
    xt = jnp.transpose(x[:, 0, :], (1, 0))

    lb = _pick_lane_block(B)
    itemsize = int(jnp.dtype(x.dtype).itemsize)
    t_tile = _pick_time_tile(T, lb, itemsize, t_tile)

    t_pad = _round_up(T, t_tile)
    if t_pad != T:
        xt = jnp.pad(xt, ((0, t_pad - T), (0, 0)))

    grid = (B // lb, t_pad // t_tile)
    row_load = lb > 256  # per-row x loads once vreg pressure would matter

    out_tb = pl.pallas_call(
        functools.partial(_inverse_pre_emphasis_kernel, coef=coef,
                          row_load=row_load),
        out_shape=jax.ShapeDtypeStruct((t_pad, B), x.dtype),
        grid_spec=pltpu.PrefetchScalarGridSpec(
            num_scalar_prefetch=0,
            grid=grid,
            in_specs=[pl.BlockSpec((t_tile, lb), lambda b, t: (t, b))],
            out_specs=pl.BlockSpec((t_tile, lb), lambda b, t: (t, b)),
            scratch_shapes=[pltpu.VMEM((1, lb), jnp.float32)],
        ),
        # Batch axis "parallel" (independent chains; sharded across v7x's two
        # TensorCores), time axis "arbitrary" (carried hidden-state scratch).
        # VMEM stays within every generation's default scoped limit by
        # construction, so no vmem_limit_bytes override is needed.
        compiler_params=pltpu.CompilerParams(
            dimension_semantics=("parallel", "arbitrary")),
    )(xt)

    return jnp.transpose(out_tb[:T, :], (1, 0))[:, None, :]


def _reference(x, coef=0.97):
    """Pure-JAX reference (same tanh RNN recurrence) for validation."""
    B, C, T = x.shape
    xs = jnp.transpose(x[:, 0, :], (1, 0)).astype(jnp.float32)

    def step(h, x_t):
        h_new = jnp.tanh(x_t + coef * h)
        return h_new, h_new

    _, ys = lax.scan(step, jnp.zeros((B,), jnp.float32), xs)
    return jnp.transpose(ys, (1, 0))[:, None, :].astype(x.dtype)


if __name__ == "__main__":
    key = jax.random.PRNGKey(0)
    k0, k1, k2 = jax.random.split(key, 3)

    # 1) Small shape consistent with the module: batch=2, channels=1, seq=16.
    x_small = jax.random.normal(k0, (2, 1, 16), dtype=jnp.float32)
    y_small = jax.block_until_ready(inverse_pre_emphasis(x_small))
    assert y_small.shape == x_small.shape
    assert jnp.allclose(y_small, _reference(x_small), atol=1e-5, rtol=1e-4)

    # 2) Longer, non-tile-aligned sequence: exercises the time grid, padding,
    #    and the carried hidden-state scratch (t_tile=512 -> 3 time tiles).
    x_long = jax.random.normal(k1, (2, 1, 1200), dtype=jnp.float32)
    y_long = jax.block_until_ready(inverse_pre_emphasis(x_long, t_tile=512))
    assert y_long.shape == x_long.shape
    assert jnp.allclose(y_long, _reference(x_long), atol=1e-5, rtol=1e-4)

    # 3) 128-aligned batch: exercises the widened lane block (lb=384 here),
    #    the >=2 batch blocks for v7x, and the per-row load/store path.
    x_wide = jax.random.normal(k2, (768, 1, 100), dtype=jnp.float32)
    y_wide = jax.block_until_ready(inverse_pre_emphasis(x_wide))
    assert y_wide.shape == x_wide.shape
    assert jnp.allclose(y_wide, _reference(x_wide), atol=1e-5, rtol=1e-4)

    print("KERNEL_OK")
</pallas_src>

<mosaic_0001>
module attributes {stable_mosaic.version = 11 : i64} {
  func.func @_inverse_pre_emphasis_kernel(%arg0: i32, %arg1: i32, %arg2: memref<16x2xf32, #tpu.memory_space<vmem>>, %arg3: memref<16x2xf32, #tpu.memory_space<vmem>>, %arg4: memref<1x2xf32, #tpu.memory_space<vmem>>) attributes {dimension_semantics = [#tpu.dimension_semantics<parallel>, #tpu.dimension_semantics<arbitrary>], iteration_bounds = array<i64: 1, 1>, scalar_prefetch = 0 : i64, scratch_operands = 1 : i64, tpu.core_type = #tpu.core_type<tc>, window_params = [{transform_indices = @transform_0, window_bounds = array<i64: 16, 2>}, {transform_indices = @transform_1, window_bounds = array<i64: 16, 2>}]} {
    %c0_i32 = arith.constant 0 : i32
    %0 = arith.cmpi eq, %arg1, %c0_i32 : i32
    %1 = arith.extui %0 : i1 to i32
    %c0_i32_0 = arith.constant 0 : i32
    %2 = arith.cmpi ne, %1, %c0_i32_0 : i32
    scf.if %2 {
      %cst_6 = arith.constant 0.000000e+00 : f32
      %8 = vector.broadcast %cst_6 : f32 to vector<1x2xf32>
      %c0_7 = arith.constant 0 : index
      %c0_8 = arith.constant 0 : index
      %9 = vector.load %arg4[%c0_7, %c0_8] : memref<1x2xf32, #tpu.memory_space<vmem>>, vector<1x2xf32>
      tpu.vector_store %arg4[%c0_7, %c0_8], %8 {strides = array<i32>} : memref<1x2xf32, #tpu.memory_space<vmem>>, vector<1x2xf32>,
    } else {
    }
    %cst = arith.constant 9.700000e-01 : f32
    %3 = vector.broadcast %cst : f32 to vector<1x2xf32>
    %c0 = arith.constant 0 : index
    %c0_1 = arith.constant 0 : index
    %4 = vector.load %arg4[%c0, %c0_1] : memref<1x2xf32, #tpu.memory_space<vmem>>, vector<1x2xf32>
    %c0_i32_2 = arith.constant 0 : i32
    %c2_i32 = arith.constant 2 : i32
    %5 = arith.addi %c0_i32_2, %c2_i32 : i32
    %c1_i32 = arith.constant 1 : i32
    %6 = scf.for %arg5 = %c0_i32_2 to %5 step %c1_i32 iter_args(%arg6 = %4) -> (vector<1x2xf32>)  : i32 {
      %c8_i32 = arith.constant 8 : i32
      %8 = arith.muli %arg5, %c8_i32 : i32
      %9 = tpu.assume_multiple %8, 8 : i32
      %10 = arith.index_cast %9 : i32 to index
      %c0_6 = arith.constant 0 : index
      %11 = vector.load %arg2[%10, %c0_6] : memref<16x2xf32, #tpu.memory_space<vmem>>, vector<8x2xf32>
      %12 = vector.extract_strided_slice %11 {offsets = [0, 0], sizes = [1, 2], strides = [1, 1]} : vector<8x2xf32> to vector<1x2xf32>
      %13 = arith.mulf %3, %arg6 : vector<1x2xf32>
      %14 = arith.addf %12, %13 : vector<1x2xf32>
      %15 = math.tanh %14 : vector<1x2xf32>
      %c0_i32_7 = arith.constant 0 : i32
      %16 = arith.addi %9, %c0_i32_7 : i32
      %17 = arith.index_cast %16 : i32 to index
      %c0_8 = arith.constant 0 : index
      %18 = vector.load %arg3[%17, %c0_8] : memref<16x2xf32, #tpu.memory_space<vmem>>, vector<1x2xf32>
      tpu.vector_store %arg3[%17, %c0_8], %15 {strides = array<i32>} : memref<16x2xf32, #tpu.memory_space<vmem>>, vector<1x2xf32>,
      %19 = vector.extract_strided_slice %11 {offsets = [1, 0], sizes = [1, 2], strides = [1, 1]} : vector<8x2xf32> to vector<1x2xf32>
      %20 = arith.mulf %3, %15 : vector<1x2xf32>
      %21 = arith.addf %19, %20 : vector<1x2xf32>
      %22 = math.tanh %21 : vector<1x2xf32>
      %c1_i32_9 = arith.constant 1 : i32
      %23 = arith.addi %9, %c1_i32_9 : i32
      %24 = arith.index_cast %23 : i32 to index
      %c0_10 = arith.constant 0 : index
      %25 = vector.load %arg3[%24, %c0_10] : memref<16x2xf32, #tpu.memory_space<vmem>>, vector<1x2xf32>
      tpu.vector_store %arg3[%24, %c0_10], %22 {strides = array<i32>} : memref<16x2xf32, #tpu.memory_space<vmem>>, vector<1x2xf32>,
      %26 = vector.extract_strided_slice %11 {offsets = [2, 0], sizes = [1, 2], strides = [1, 1]} : vector<8x2xf32> to vector<1x2xf32>
      %27 = arith.mulf %3, %22 : vector<1x2xf32>
      %28 = arith.addf %26, %27 : vector<1x2xf32>
      %29 = math.tanh %28 : vector<1x2xf32>
      %c2_i32_11 = arith.constant 2 : i32
      %30 = arith.addi %9, %c2_i32_11 : i32
      %31 = arith.index_cast %30 : i32 to index
      %c0_12 = arith.constant 0 : index
      %32 = vector.load %arg3[%31, %c0_12] : memref<16x2xf32, #tpu.memory_space<vmem>>, vector<1x2xf32>
      tpu.vector_store %arg3[%31, %c0_12], %29 {strides = array<i32>} : memref<16x2xf32, #tpu.memory_space<vmem>>, vector<1x2xf32>,
      %33 = vector.extract_strided_slice %11 {offsets = [3, 0], sizes = [1, 2], strides = [1, 1]} : vector<8x2xf32> to vector<1x2xf32>
      %34 = arith.mulf %3, %29 : vector<1x2xf32>
      %35 = arith.addf %33, %34 : vector<1x2xf32>
      %36 = math.tanh %35 : vector<1x2xf32>
      %c3_i32 = arith.constant 3 : i32
      %37 = arith.addi %9, %c3_i32 : i32
      %38 = arith.index_cast %37 : i32 to index
      %c0_13 = arith.constant 0 : index
      %39 = vector.load %arg3[%38, %c0_13] : memref<16x2xf32, #tpu.memory_space<vmem>>, vector<1x2xf32>
      tpu.vector_store %arg3[%38, %c0_13], %36 {strides = array<i32>} : memref<16x2xf32, #tpu.memory_space<vmem>>, vector<1x2xf32>,
      %40 = vector.extract_strided_slice %11 {offsets = [4, 0], sizes = [1, 2], strides = [1, 1]} : vector<8x2xf32> to vector<1x2xf32>
      %41 = arith.mulf %3, %36 : vector<1x2xf32>
      %42 = arith.addf %40, %41 : vector<1x2xf32>
      %43 = math.tanh %42 : vector<1x2xf32>
      %c4_i32 = arith.constant 4 : i32
      %44 = arith.addi %9, %c4_i32 : i32
      %45 = arith.index_cast %44 : i32 to index
      %c0_14 = arith.constant 0 : index
      %46 = vector.load %arg3[%45, %c0_14] : memref<16x2xf32, #tpu.memory_space<vmem>>, vector<1x2xf32>
      tpu.vector_store %arg3[%45, %c0_14], %43 {strides = array<i32>} : memref<16x2xf32, #tpu.memory_space<vmem>>, vector<1x2xf32>,
      %47 = vector.extract_strided_slice %11 {offsets = [5, 0], sizes = [1, 2], strides = [1, 1]} : vector<8x2xf32> to vector<1x2xf32>
      %48 = arith.mulf %3, %43 : vector<1x2xf32>
      %49 = arith.addf %47, %48 : vector<1x2xf32>
      %50 = math.tanh %49 : vector<1x2xf32>
      %c5_i32 = arith.constant 5 : i32
      %51 = arith.addi %9, %c5_i32 : i32
      %52 = arith.index_cast %51 : i32 to index
      %c0_15 = arith.constant 0 : index
      %53 = vector.load %arg3[%52, %c0_15] : memref<16x2xf32, #tpu.memory_space<vmem>>, vector<1x2xf32>
      tpu.vector_store %arg3[%52, %c0_15], %50 {strides = array<i32>} : memref<16x2xf32, #tpu.memory_space<vmem>>, vector<1x2xf32>,
      %54 = vector.extract_strided_slice %11 {offsets = [6, 0], sizes = [1, 2], strides = [1, 1]} : vector<8x2xf32> to vector<1x2xf32>
      %55 = arith.mulf %3, %50 : vector<1x2xf32>
      %56 = arith.addf %54, %55 : vector<1x2xf32>
      %57 = math.tanh %56 : vector<1x2xf32>
      %c6_i32 = arith.constant 6 : i32
      %58 = arith.addi %9, %c6_i32 : i32
      %59 = arith.index_cast %58 : i32 to index
      %c0_16 = arith.constant 0 : index
      %60 = vector.load %arg3[%59, %c0_16] : memref<16x2xf32, #tpu.memory_space<vmem>>, vector<1x2xf32>
      tpu.vector_store %arg3[%59, %c0_16], %57 {strides = array<i32>} : memref<16x2xf32, #tpu.memory_space<vmem>>, vector<1x2xf32>,
      %61 = vector.extract_strided_slice %11 {offsets = [7, 0], sizes = [1, 2], strides = [1, 1]} : vector<8x2xf32> to vector<1x2xf32>
      %62 = arith.mulf %3, %57 : vector<1x2xf32>
      %63 = arith.addf %61, %62 : vector<1x2xf32>
      %64 = math.tanh %63 : vector<1x2xf32>
      %c7_i32 = arith.constant 7 : i32
      %65 = arith.addi %9, %c7_i32 : i32
      %66 = arith.index_cast %65 : i32 to index
      %c0_17 = arith.constant 0 : index
      %67 = vector.load %arg3[%66, %c0_17] : memref<16x2xf32, #tpu.memory_space<vmem>>, vector<1x2xf32>
      tpu.vector_store %arg3[%66, %c0_17], %64 {strides = array<i32>} : memref<16x2xf32, #tpu.memory_space<vmem>>, vector<1x2xf32>,
      scf.yield %64 : vector<1x2xf32>
    }
    %c2_i32_3 = arith.constant 2 : i32
    %c0_4 = arith.constant 0 : index
    %c0_5 = arith.constant 0 : index
    %7 = vector.load %arg4[%c0_4, %c0_5] : memref<1x2xf32, #tpu.memory_space<vmem>>, vector<1x2xf32>
    tpu.vector_store %arg4[%c0_4, %c0_5], %6 {strides = array<i32>} : memref<1x2xf32, #tpu.memory_space<vmem>>, vector<1x2xf32>,
    return
  }
  func.func @transform_0(%arg0: i32, %arg1: i32) -> (i32, i32) {
    %c0_i32 = arith.constant 0 : i32
    return %arg1, %arg0 : i32, i32
  }
  func.func @transform_1(%arg0: i32, %arg1: i32) -> (i32, i32) {
    %c0_i32 = arith.constant 0 : i32
    return %arg1, %arg0 : i32, i32
  }
}

</mosaic_0001>

<llo_original>
// kernel: tpu_custom_call.1
$region0: #{tpu_custom_call.1}
  #allocation0 [shape = 'u32[]', space=smem, size = 0x4, offset = 0x4, fixed_abs, tag = 'smem constant byte address 0x4 - core index']
  #allocation1 [shape = 'u32[144,128]{1,0:T(1,128)}', space=vmem, size = 0x12000, scoped, tag = 'internal scratch']
  #allocation2 [shape = 'f32[1,2]{1,0:T(1,128)}', space=vmem, size = 0x200, scoped, tag = 'scratch operand']
  %s0 = inlined_call_operand.vmem [shape: f32[16,2], index: 0, kind: input, shape index: {}]
  %s1 = inlined_call_operand.vmem [shape: f32[16,2], index: 1, kind: output, shape index: {}]
  %s2 = sld [smem:[#allocation0]]
  $region25: #{tpu_custom_call.1} parent=0
    _
  %s4 = ssub.s32 1, %s2
  %s5 = scalar_select 0, %s4, %s2
  // Predicated region
  $region2: #{tpu_custom_call.1} parent=0 // pred_check
    _
  $region3: #{tpu_custom_call.1} parent=0 // pred_check_branch
    %7 = sbr.rel (0) target = $region5
  $region4: #{tpu_custom_call.1} parent=0 // pred_region
    _
  $region5: #{tpu_custom_call.1} parent=0 // pred_fallthru
    _
  %p8 = scmp.eq.s32.totalorder 0, 0
  // Predicated region
  $region6: #{tpu_custom_call.1} parent=0 // pred_check
    %p9 = pneg %p8
  $region7: #{tpu_custom_call.1} parent=0 // pred_check_branch
    %11 = sbr.rel (%p9) target = $region9
  $region8: #{tpu_custom_call.1} parent=0 // pred_region
    %vm12 = vcmask 8192
    %13 = vst.msk [vmem:[#allocation2] sm:$0x1] %vm12, 0.0
  $region9: #{tpu_custom_call.1} parent=0 // pred_fallthru
    _
  %v14 = vld [vmem:[#allocation2] sm:$0x1]
  loop: start=0, step=1, limit=2
  $region10: #{tpu_custom_call.1} parent=0 // loop_pre_header
    _
  $region11: #{tpu_custom_call.1} parent=0 // loop_header
    %s16 = sphi 0, %s20
    %p17 = scmp.ge.s32.totalorder %s16, 2
    %v21 = vphi %v14, %v102
  $region12: #{tpu_custom_call.1} parent=0 // loop_header_branch
    %19 = sbr.rel (%p17) target = $region16
  $region13: #{tpu_custom_call.1} parent=0 // loop_body
    %s22 = smul.u32 %s16, 8
    %s23 = scalar_lea.vmem %s0, %s22
    %v24 = vld [vmem:[%s23] sm:$0xff]
    %v25 = vmul.f32 %v21, 0.97
    %v26 = vadd.f32 %v24, %v25
    %v27 = vtanh.pop %v26
    %s28 = scalar_lea.vmem %s1, %s22
    %vm29 = vcmask 8192
    %30 = vst.msk [vmem:[%s28] sm:$0x1] %vm29, %v27
    %v31 = vmul.f32 %v27, 0.97
    %v33 = vrot.slane %v31, 7
    %v35 = vadd.f32 %v24, %v33
    %v36 = vtanh.pop %v35
    %s37 = sadd.s32 %s22, 1
    %s38 = scalar_lea.vmem %s1, %s37
    %vm39 = vcmask 9217
    %40 = vst.msk [vmem:[%s38 - $0x1] sm:$0x2] %vm39, %v36
    %v41 = vmul.f32 %v36, 0.97
    %v43 = vrot.slane %v41, 7
    %v45 = vadd.f32 %v24, %v43
    %v46 = vtanh.pop %v45
    %s47 = sadd.s32 %s22, 2
    %s48 = scalar_lea.vmem %s1, %s47
    %vm49 = vcmask 10242
    %50 = vst.msk [vmem:[%s48 - $0x2] sm:$0x4] %vm49, %v46
    %v51 = vmul.f32 %v46, 0.97
    %v53 = vrot.slane %v51, 7
    %v55 = vadd.f32 %v24, %v53
    %v56 = vtanh.pop %v55
    %s57 = sadd.s32 %s22, 3
    %s58 = scalar_lea.vmem %s1, %s57
    %vm59 = vcmask 11267
    %60 = vst.msk [vmem:[%s58 - $0x3] sm:$0x8] %vm59, %v56
    %v61 = vmul.f32 %v56, 0.97
    %v63 = vrot.slane %v61, 7
    %v65 = vadd.f32 %v24, %v63
    %v66 = vtanh.pop %v65
    %s67 = sadd.s32 %s22, 4
    %s68 = scalar_lea.vmem %s1, %s67
    %vm69 = vcmask 12292
    %70 = vst.msk [vmem:[%s68 - $0x4] sm:$0x10] %vm69, %v66
    %v71 = vmul.f32 %v66, 0.97
    %v73 = vrot.slane %v71, 7
    %v75 = vadd.f32 %v24, %v73
    %v76 = vtanh.pop %v75
    %s77 = sadd.s32 %s22, 5
    %s78 = scalar_lea.vmem %s1, %s77
    %vm79 = vcmask 13317
    %80 = vst.msk [vmem:[%s78 - $0x5] sm:$0x20] %vm79, %v76
    %v81 = vmul.f32 %v76, 0.97
    %v83 = vrot.slane %v81, 7
    %v85 = vadd.f32 %v24, %v83
    %v86 = vtanh.pop %v85
    %s87 = sadd.s32 %s22, 6
    %s88 = scalar_lea.vmem %s1, %s87
    %vm89 = vcmask 14342
    %90 = vst.msk [vmem:[%s88 - $0x6] sm:$0x40] %vm89, %v86
    %v91 = vmul.f32 %v86, 0.97
    %v93 = vrot.slane %v91, 7
    %v95 = vadd.f32 %v24, %v93
    %v96 = vtanh.pop %v95
    %s97 = sadd.s32 %s22, 7
    %s98 = scalar_lea.vmem %s1, %s97
    %vm99 = vcmask 15367
    %100 = vst.msk [vmem:[%s98 - $0x7] sm:$0x80] %vm99, %v96
    %v102 = vrot.slane %v96, 7
  $region14: #{tpu_custom_call.1} parent=0 // loop_footer
    %s20 = sadd.s32 1, %s16
  $region15: #{tpu_custom_call.1} parent=0 // loop_footer_branch
    %15 = sbr.rel target = $region11
  $region16: #{tpu_custom_call.1} parent=0 // loop_exit
    _
  %vm104 = vcmask 8192
  %105 = vst.msk [vmem:[#allocation2] sm:$0x1] %vm104, %v21
  // Predicated region
  $region17: #{tpu_custom_call.1} parent=0 // pred_check
    _
  $region18: #{tpu_custom_call.1} parent=0 // pred_check_branch
    %107 = sbr.rel (0) target = $region20
  $region19: #{tpu_custom_call.1} parent=0 // pred_region
    _
  $region20: #{tpu_custom_call.1} parent=0 // pred_fallthru
    _
  // Predicated region
  $region21: #{tpu_custom_call.1} parent=0 // pred_check
    _
  $region22: #{tpu_custom_call.1} parent=0 // pred_check_branch
    %109 = sbr.rel (0) target = $region24
  $region23: #{tpu_custom_call.1} parent=0 // pred_region
    _
  $region24: #{tpu_custom_call.1} parent=0 // pred_fallthru
    _

</llo_original>
